<compile_context>
chip_gen: v5e
topology: v5e:2x2
jax: 0.10.0
libtpu: 0.0.40
codegen_flags: <defaults>
</compile_context>

<pallas_src>
import jax
import jax.numpy as jnp
from jax.experimental import pallas as pl
from jax.experimental.pallas import tpu as pltpu


def _round_up(x, m):
    return (x + m - 1) // m * m


def _conv1x1_kernel(xu_ref, w_ref, b_ref, o_ref):
    # xu_ref: (K, tpix)    streamed activation tile (pixels on lanes)
    # w_ref:  (tco, K)     VMEM-resident weight tile
    # b_ref:  (tco, 1)     f32 bias column
    # o_ref:  (tco, tpix)  NCHW output tile (lane-dense stores along pixels)
    acc = jnp.dot(w_ref[...], xu_ref[...], preferred_element_type=jnp.float32)
    # f32 accumulate + f32 bias epilogue (keeps v5e, which has no bf16 VPU,
    # on the f32 path); single cast on store.
    o_ref[...] = (acc + b_ref[...]).astype(o_ref.dtype)


def _pick_tiles(n_pix, k, c_out, itemsize, *, budget_bytes=28 << 20):
    """Pick (pixel_tile, cout_tile).

    Weight (c_out, k) stays fully VMEM-resident whenever it fits in half the
    budget; otherwise Cout is tiled (multiples of 32 keep bf16/int8 sublane
    packing legal).  The pixel tile is the largest power-of-two multiple of
    128 (capped at 2048) whose double-buffered activation+output streams fit
    the remaining budget.  28 MiB is chosen for v7x (64 MiB VMEM/TC); v5e/v6e
    (128 MiB) would also accept larger budgets but gain nothing since the
    weight is already resident and these tiles already reach the HBM roofline.
    """
    tco = c_out
    while tco > 32 and tco * k * itemsize > budget_bytes // 2:
        tco = _round_up(tco // 2, 32)

    def working_set(tp):
        # resident weight + double-buffered activation block + output block
        return tco * k * itemsize + 2 * itemsize * tp * (k + tco)

    tpix = 2048
    while tpix > 128 and working_set(tpix) > budget_bytes:
        tpix //= 2
    if n_pix <= tpix:
        tpix = n_pix  # single full-width tile (full-dim block, any size legal)
    return tpix, tco


def _conv1x1_nchw(xu, w, b_col, out_dtype):
    """xu: (B, K, Npix), w: (Cout, K), b_col: (Cout, 1) f32 -> (B, Cout, Npix)."""
    B, K, n_pix = xu.shape
    c_out = w.shape[0]
    itemsize = jnp.dtype(xu.dtype).itemsize
    tpix, tco = _pick_tiles(n_pix, K, c_out, itemsize)

    # Grid: large pixel axis leading (v7x megacore shards it; no-op on v5e/v6e),
    # batch fastest.  The weight/bias block index depends only on `co`, which in
    # the common tco == Cout case never changes -> fetched exactly once.
    grid = (pl.cdiv(n_pix, tpix), pl.cdiv(c_out, tco), B)

    flops = 2 * B * n_pix * K * c_out
    bytes_accessed = (itemsize * (B * K * n_pix + c_out * K) + 4 * c_out
                      + jnp.dtype(out_dtype).itemsize * B * c_out * n_pix)

    return pl.pallas_call(
        _conv1x1_kernel,
        out_shape=jax.ShapeDtypeStruct((B, c_out, n_pix), out_dtype),
        grid_spec=pltpu.PrefetchScalarGridSpec(
            num_scalar_prefetch=0,
            grid=grid,
            in_specs=[
                # Streamed activation; leading batch dim squeezed out.
                pl.BlockSpec((None, K, tpix), lambda j, co, b: (b, 0, j)),
                # Weight + bias: block index constant in (j, b) -> VMEM resident.
                pl.BlockSpec((tco, K), lambda j, co, b: (co, 0)),
                pl.BlockSpec((tco, 1), lambda j, co, b: (co, 0)),
            ],
            out_specs=pl.BlockSpec((None, tco, tpix), lambda j, co, b: (b, co, j)),
        ),
        compiler_params=pltpu.CompilerParams(
            # Pure map, no cross-step accumulation -> all axes independent.
            dimension_semantics=("parallel", "parallel", "parallel"),
            # ~28 MiB working set + headroom; fits v7x's 64 MiB physical VMEM.
            vmem_limit_bytes=48 * 1024 * 1024,
        ),
        cost_estimate=pl.CostEstimate(
            flops=flops, transcendentals=0, bytes_accessed=bytes_accessed),
    )(xu, w, b_col)


def prepare_params(weight, bias, compute_dtype=jnp.float32):
    """One-time parameter prep (hoisted out of the per-call path).

    weight: (Cout, 4*Cin) or PyTorch Conv2d layout (Cout, 4*Cin, 1, 1).
    bias:   (Cout,).
    Returns:
      w     (Cout, 4*Cin) in compute_dtype -- used directly as the stationary
            LHS of (Cout,K)@(K,pixels): no transpose, no Cout padding.
      b_col (Cout, 1) kept in f32 for the f32 epilogue.
    """
    w = jnp.asarray(weight)
    if w.ndim == 4:                      # PyTorch Conv2d weight (Cout, K, 1, 1)
        w = w.reshape(w.shape[0], w.shape[1])
    w = w.astype(compute_dtype)
    b_col = jnp.asarray(bias).astype(jnp.float32).reshape(-1, 1)
    return w, b_col


def downsample_forward(x, w, b_col):
    """x: (B, Cin, H, W) NCHW, H and W even -> (B, Cout, H//2, W//2) NCHW."""
    B, C, H, W = x.shape
    assert H % 2 == 0 and W % 2 == 0, "Downsample needs even spatial dims"
    Hd, Wd = H // 2, W // 2
    c_out = w.shape[0]

    # Pixel-unshuffle 'b c (h p1) (w p2) -> b (c p1 p2) (h w)' as ONE XLA
    # transpose; the cast to the compute dtype fuses into the same copy.  The
    # resulting channel order c*4 + p1*2 + p2 matches the PyTorch '(c p1 p2)'
    # weight layout, so the weight is used as-is.
    # TODO(synk): folding this unshuffle into the Pallas kernel (reading raw
    # NCHW x) needs lane-strided (p2::2) loads or an in-kernel minor-dim
    # relayout, neither of which lowers reliably in Mosaic today; doing so
    # would remove the last extra HBM round trip of the activation.
    xu = jnp.transpose(x.reshape(B, C, Hd, 2, Wd, 2),
                       (0, 1, 3, 5, 2, 4)).reshape(B, 4 * C, Hd * Wd)
    xu = xu.astype(w.dtype)

    y = _conv1x1_nchw(xu, w, b_col, out_dtype=w.dtype)   # (B, Cout, Hd*Wd)
    return y.reshape(B, c_out, Hd, Wd)                   # free reshape (NCHW)


if __name__ == "__main__":
    B, Cin, H, W = 2, 4, 16, 16
    Cout = 8

    key = jax.random.PRNGKey(0)
    kx, kw, kb = jax.random.split(key, 3)

    x = jax.random.normal(kx, (B, Cin, H, W), dtype=jnp.float32)

    # Conv2d(in_channels*4, out_channels, 1) default-style init.
    fan_in = 4 * Cin
    bound = 1.0 / (fan_in ** 0.5)
    weight = jax.random.uniform(kw, (Cout, 4 * Cin, 1, 1), jnp.float32,
                                -bound, bound)
    bias = jax.random.uniform(kb, (Cout,), jnp.float32, -bound, bound)

    # Plain-JAX reference (mirrors the PyTorch rearrange + 1x1 conv).
    w2d = weight.reshape(Cout, 4 * Cin)
    xr = x.reshape(B, Cin, H // 2, 2, W // 2, 2)
    xr = jnp.transpose(xr, (0, 1, 3, 5, 2, 4)).reshape(B, 4 * Cin, H // 2, W // 2)
    ref = (jnp.einsum("bkhw,ok->bohw", xr, w2d,
                      precision=jax.lax.Precision.HIGHEST)
           + bias[None, :, None, None])

    # ---- f32 path (tight check) --------------------------------------------
    w_f32, b_col = prepare_params(weight, bias, compute_dtype=jnp.float32)
    y = jax.jit(downsample_forward)(x, w_f32, b_col)
    jax.block_until_ready(y)
    assert y.shape == (B, Cout, H // 2, W // 2)
    assert jnp.allclose(y, ref, atol=1e-4, rtol=1e-4)

    # ---- bf16 path (MXU-native inputs on v6e/v7x, halves HBM traffic) -------
    w_bf16, b_col16 = prepare_params(weight, bias, compute_dtype=jnp.bfloat16)
    y16 = jax.jit(downsample_forward)(x, w_bf16, b_col16)
    jax.block_until_ready(y16)
    assert y16.dtype == jnp.bfloat16
    assert jnp.allclose(y16.astype(jnp.float32), ref, atol=5e-2, rtol=5e-2)

    print("KERNEL_OK")
</pallas_src>

<mosaic_0001>
module attributes {stable_mosaic.version = 11 : i64} {
  func.func @_conv1x1_kernel(%arg0: i32, %arg1: i32, %arg2: i32, %arg3: memref<1x16x64xf32, #tpu.memory_space<vmem>>, %arg4: memref<8x16xf32, #tpu.memory_space<vmem>>, %arg5: memref<8x1xf32, #tpu.memory_space<vmem>>, %arg6: memref<1x8x64xf32, #tpu.memory_space<vmem>>) attributes {dimension_semantics = [#tpu.dimension_semantics<parallel>, #tpu.dimension_semantics<parallel>, #tpu.dimension_semantics<parallel>], iteration_bounds = array<i64: 1, 1, 2>, scalar_prefetch = 0 : i64, scratch_operands = 0 : i64, tpu.core_type = #tpu.core_type<tc>, window_params = [{transform_indices = @transform_0, window_bounds = array<i64: 1, 16, 64>}, {transform_indices = @transform_1, window_bounds = array<i64: 8, 16>}, {transform_indices = @transform_2, window_bounds = array<i64: 8, 1>}, {transform_indices = @transform_3, window_bounds = array<i64: 1, 8, 64>}]} {
    %c0 = arith.constant 0 : index
    %c0_0 = arith.constant 0 : index
    %0 = vector.load %arg4[%c0, %c0_0] : memref<8x16xf32, #tpu.memory_space<vmem>>, vector<8x16xf32>
    %c0_1 = arith.constant 0 : index
    %c0_2 = arith.constant 0 : index
    %c0_3 = arith.constant 0 : index
    %1 = vector.load %arg3[%c0_1, %c0_2, %c0_3] : memref<1x16x64xf32, #tpu.memory_space<vmem>>, vector<1x16x64xf32>
    %2 = vector.shape_cast %1 : vector<1x16x64xf32> to vector<16x64xf32>
    %cst = arith.constant dense<0.000000e+00> : vector<8x64xf32>
    %3 = tpu.matmul %0, %2, %cst {dimension_numbers = #tpu.dot_dimension_numbers<[1], [0], [0], [1], [0, 0, 1, 1], [], []>} : vector<8x16xf32>, vector<16x64xf32>, vector<8x64xf32> -> vector<8x64xf32>
    %c0_4 = arith.constant 0 : index
    %c0_5 = arith.constant 0 : index
    %4 = vector.load %arg5[%c0_4, %c0_5] : memref<8x1xf32, #tpu.memory_space<vmem>>, vector<8x1xf32>
    %5 = vector.broadcast %4 : vector<8x1xf32> to vector<8x64xf32>
    %6 = arith.addf %3, %5 : vector<8x64xf32>
    %c0_6 = arith.constant 0 : index
    %c0_7 = arith.constant 0 : index
    %c0_8 = arith.constant 0 : index
    %7 = vector.load %arg6[%c0_6, %c0_7, %c0_8] : memref<1x8x64xf32, #tpu.memory_space<vmem>>, vector<1x8x64xf32>
    %8 = vector.shape_cast %7 : vector<1x8x64xf32> to vector<8x64xf32>
    %9 = vector.shape_cast %6 : vector<8x64xf32> to vector<1x8x64xf32>
    tpu.vector_store %arg6[%c0_6, %c0_7, %c0_8], %9 {strides = array<i32>} : memref<1x8x64xf32, #tpu.memory_space<vmem>>, vector<1x8x64xf32>,
    return
  }
  func.func @transform_0(%arg0: i32, %arg1: i32, %arg2: i32) -> (i32, i32, i32) {
    %c0_i32 = arith.constant 0 : i32
    %c0_i32_0 = arith.constant 0 : i32
    return %arg2, %c0_i32, %arg0 : i32, i32, i32
  }
  func.func @transform_1(%arg0: i32, %arg1: i32, %arg2: i32) -> (i32, i32) {
    %c0_i32 = arith.constant 0 : i32
    %c0_i32_0 = arith.constant 0 : i32
    return %arg1, %c0_i32 : i32, i32
  }
  func.func @transform_2(%arg0: i32, %arg1: i32, %arg2: i32) -> (i32, i32) {
    %c0_i32 = arith.constant 0 : i32
    %c0_i32_0 = arith.constant 0 : i32
    return %arg1, %c0_i32 : i32, i32
  }
  func.func @transform_3(%arg0: i32, %arg1: i32, %arg2: i32) -> (i32, i32, i32) {
    %c0_i32 = arith.constant 0 : i32
    return %arg2, %arg1, %arg0 : i32, i32, i32
  }
}

</mosaic_0001>

<llo_original>
// kernel: downsample_forward.1
$region0: #{downsample_forward.1}
  #allocation0 [shape = 'u32[]', space=smem, size = 0x4, offset = 0x4, fixed_abs, tag = 'smem constant byte address 0x4 - core index']
  #allocation1 [shape = 'u32[72,128]{1,0:T(1,128)}', space=vmem, size = 0x9000, scoped, tag = 'internal scratch']
  %s0 = inlined_call_operand.vmem [shape: f32[2,16,64], index: 0, kind: input, shape index: {}]
  %s1 = inlined_call_operand.vmem [shape: f32[8,16], index: 1, kind: input, shape index: {}]
  %s2 = inlined_call_operand.vmem [shape: f32[8,1], index: 2, kind: input, shape index: {}]
  %s3 = inlined_call_operand.vmem [shape: f32[2,8,64], index: 3, kind: output, shape index: {}]
  %s4 = sld [smem:[#allocation0]]
  $region45: #{downsample_forward.1} parent=0
    _
  %s6 = ssub.s32 1, %s4
  %s7 = scalar_select 0, %s6, %s4
  loop: start=0, step=1, limit=4
  $region2: #{downsample_forward.1} parent=0 // loop_pre_header
    _
  $region3: #{downsample_forward.1} parent=0 // loop_header
    %s9 = sphi 0, %s13
    %p10 = scmp.ge.s32.totalorder %s9, 4
    %s16 = sphi 0, %s35
    %s17 = sphi 0, %s31
    %s18 = sphi 0, %s27
    %s19 = sphi 0, %s16
    %s20 = sphi 0, %s17
    %s21 = sphi 0, %s18
    %s22 = sphi 0, %s19
    %s23 = sphi 0, %s20
    %s24 = sphi 0, %s21
    %s40 = sphi 0, %s42
    %s43 = sphi 0, %s40
    %s44 = sphi 0, %s43
    %s60 = sphi 0, %s44
    %s66 = sphi 0, %s68
    %s69 = sphi 0, %s66
    %s70 = sphi 0, %s69
    %s86 = sphi 0, %s70
    %s92 = sphi 0, %s94
    %s95 = sphi 0, %s92
    %s96 = sphi 0, %s95
    %s112 = sphi 0, %s96
    %s122 = sphi 0, %s124
    %s125 = sphi 0, %s122
    %s126 = sphi 0, %s125
    %s142 = sphi 0, %s126
  $region4: #{downsample_forward.1} parent=0 // loop_header_branch
    %12 = sbr.rel (%p10) target = $region8
  $region5: #{downsample_forward.1} parent=0 // loop_body
    %s14 = ssub.s32 %s9, 1
    %s15 = ssub.s32 %s9, 2
    %s25 = sadd.s32 1, %s18
    %p26 = scmp.ge.s32.totalorder %s25, 2
    %s27 = scalar_select %p26, 0, %s25
    %s28 = sadd.s32 1, %s17
    %s29 = scalar_select %p26, %s28, %s17
    %p30 = scmp.ge.s32.totalorder %s29, 1
    %s31 = scalar_select %p30, 0, %s29
    %s32 = sadd.s32 1, %s16
    %s33 = scalar_select %p30, %s32, %s16
    %p34 = scmp.ge.s32.totalorder %s33, 1
    %s35 = scalar_select %p34, 0, %s33
    %s36 = ssub.s32 %s18, %s27
    %s37 = ssub.s32 %s16, %s35
    %s38 = sor.u32 %s36, %s37
    %p39 = scmp.eq.s32.totalorder %s38, 0
    %s41 = sadd.s32 %s40, 1
    %s42 = scalar_select %p39, %s40, %s41
    %p45 = pneg %p39
    %p46 = scmp.eq.s32.totalorder %s9, 1
    %p47 = por %p45, %p46
    %p48 = scmp.ne.s32.totalorder %s40, %s43
    %p49 = scmp.eq.s32.totalorder %s9, 0
    %p50 = por %p48, %p49
    %p51 = scmp.ne.s32.totalorder %s40, %s43
    %p52 = scmp.eq.s32.totalorder %s14, 1
    %p53 = por %p51, %p52
    %p54 = scmp.ne.s32.totalorder %s43, %s44
    %p55 = scmp.eq.s32.totalorder %s14, 0
    %p56 = por %p54, %p55
    %p57 = scmp.ne.s32.totalorder %s43, %s44
    %p58 = scmp.eq.s32.totalorder %s15, 1
    %p59 = por %p57, %p58
    %p61 = scmp.ne.s32.totalorder %s44, %s60
    %p62 = scmp.eq.s32.totalorder %s15, 0
    %p63 = por %p61, %p62
    %s64 = ssub.s32 %s17, %s31
    %p65 = scmp.eq.s32.totalorder %s64, 0
    %s67 = sadd.s32 %s66, 1
    %s68 = scalar_select %p65, %s66, %s67
    %p71 = pneg %p65
    %p72 = scmp.eq.s32.totalorder %s9, 1
    %p73 = por %p71, %p72
    %p74 = scmp.ne.s32.totalorder %s66, %s69
    %p75 = scmp.eq.s32.totalorder %s9, 0
    %p76 = por %p74, %p75
    %p77 = scmp.ne.s32.totalorder %s66, %s69
    %p78 = scmp.eq.s32.totalorder %s14, 1
    %p79 = por %p77, %p78
    %p80 = scmp.ne.s32.totalorder %s69, %s70
    %p81 = scmp.eq.s32.totalorder %s14, 0
    %p82 = por %p80, %p81
    %p83 = scmp.ne.s32.totalorder %s69, %s70
    %p84 = scmp.eq.s32.totalorder %s15, 1
    %p85 = por %p83, %p84
    %p87 = scmp.ne.s32.totalorder %s70, %s86
    %p88 = scmp.eq.s32.totalorder %s15, 0
    %p89 = por %p87, %p88
    %s90 = ssub.s32 %s17, %s31
    %p91 = scmp.eq.s32.totalorder %s90, 0
    %s93 = sadd.s32 %s92, 1
    %s94 = scalar_select %p91, %s92, %s93
    %p97 = pneg %p91
    %p98 = scmp.eq.s32.totalorder %s9, 1
    %p99 = por %p97, %p98
    %p100 = scmp.ne.s32.totalorder %s92, %s95
    %p101 = scmp.eq.s32.totalorder %s9, 0
    %p102 = por %p100, %p101
    %p103 = scmp.ne.s32.totalorder %s92, %s95
    %p104 = scmp.eq.s32.totalorder %s14, 1
    %p105 = por %p103, %p104
    %p106 = scmp.ne.s32.totalorder %s95, %s96
    %p107 = scmp.eq.s32.totalorder %s14, 0
    %p108 = por %p106, %p107
    %p109 = scmp.ne.s32.totalorder %s95, %s96
    %p110 = scmp.eq.s32.totalorder %s15, 1
    %p111 = por %p109, %p110
    %p113 = scmp.ne.s32.totalorder %s96, %s112
    %p114 = scmp.eq.s32.totalorder %s15, 0
    %p115 = por %p113, %p114
    %s116 = ssub.s32 %s18, %s27
    %s117 = ssub.s32 %s17, %s31
    %s118 = sor.u32 %s116, %s117
    %s119 = ssub.s32 %s16, %s35
    %s120 = sor.u32 %s118, %s119
    %p121 = scmp.eq.s32.totalorder %s120, 0
    %s123 = sadd.s32 %s122, 1
    %s124 = scalar_select %p121, %s122, %s123
    %p127 = pneg %p121
    %p128 = scmp.eq.s32.totalorder %s9, 1
    %p129 = por %p127, %p128
    %p130 = scmp.ne.s32.totalorder %s122, %s125
    %p131 = scmp.eq.s32.totalorder %s9, 0
    %p132 = por %p130, %p131
    %p133 = scmp.ne.s32.totalorder %s122, %s125
    %p134 = scmp.eq.s32.totalorder %s14, 1
    %p135 = por %p133, %p134
    %p136 = scmp.ne.s32.totalorder %s125, %s126
    %p137 = scmp.eq.s32.totalorder %s14, 0
    %p138 = por %p136, %p137
    %p139 = scmp.ne.s32.totalorder %s125, %s126
    %p140 = scmp.eq.s32.totalorder %s15, 1
    %p141 = por %p139, %p140
    %p143 = scmp.ne.s32.totalorder %s126, %s142
    %p144 = scmp.eq.s32.totalorder %s15, 0
    %p145 = por %p143, %p144
    %p146 = scmp.le.s32.totalorder 1, %s9
    %p147 = scmp.lt.s32.totalorder %s9, 3
    %p148 = pnand %p146, %p147
    %p149 = pneg %p148
    // Predicated region
    $region9: #{downsample_forward.1} parent=5 // pred_check
      _
    $region10: #{downsample_forward.1} parent=5 // pred_check_branch
      %151 = sbr.rel (%p148) target = $region12
    $region11: #{downsample_forward.1} parent=5 // pred_region
      %s152 = ssub.s32 %s9, 1
      // Predicated region
      $region13: #{downsample_forward.1} parent=11 // pred_check
        %p153 = pneg %p82
      $region14: #{downsample_forward.1} parent=11 // pred_check_branch
        %155 = sbr.rel (%p153) target = $region16
      $region15: #{downsample_forward.1} parent=11 // pred_region
        %p156 = scmp.lt.s32.totalorder %s20, 0
        %s157 = scalar_select %p156, %s20, 0
        %s158 = smul.addr %s157, 8
        %s159 = scalar_lea.vmem %s1, %s158
      $region16: #{downsample_forward.1} parent=11 // pred_fallthru
        _
      // Predicated region
      $region17: #{downsample_forward.1} parent=11 // pred_check
        %p160 = pneg %p108
      $region18: #{downsample_forward.1} parent=11 // pred_check_branch
        %162 = sbr.rel (%p160) target = $region20
      $region19: #{downsample_forward.1} parent=11 // pred_region
        %p163 = scmp.lt.s32.totalorder %s20, 0
        %s164 = scalar_select %p163, %s20, 0
        %s165 = smul.addr %s164, 8
        %s166 = scalar_lea.vmem %s2, %s165
      $region20: #{downsample_forward.1} parent=11 // pred_fallthru
        _
    $region12: #{downsample_forward.1} parent=5 // pred_fallthru
      _
    %p167 = scmp.lt.s32.totalorder %s9, 2
    // Predicated region
    $region21: #{downsample_forward.1} parent=5 // pred_check
      %p168 = pneg %p167
    $region22: #{downsample_forward.1} parent=5 // pred_check_branch
      %170 = sbr.rel (%p168) target = $region24
    $region23: #{downsample_forward.1} parent=5 // pred_region
      // Predicated region
      $region25: #{downsample_forward.1} parent=23 // pred_check
        %p171 = pneg %p50
      $region26: #{downsample_forward.1} parent=23 // pred_check_branch
        %173 = sbr.rel (%p171) target = $region28
      $region27: #{downsample_forward.1} parent=23 // pred_region
        %p174 = scmp.lt.s32.totalorder %s18, 1
        %s175 = scalar_select %p174, %s18, 1
        %p176 = scmp.lt.s32.totalorder %s16, 0
        %s177 = scalar_select %p176, %s16, 0
        %s178 = smul.addr %s175, 2
        %s179 = sadd.s32 %s177, %s178
        %s180 = smul.addr %s179, 8
        %s181 = scalar_lea.vmem %s0, %s180
      $region28: #{downsample_forward.1} parent=23 // pred_fallthru
        _
    $region24: #{downsample_forward.1} parent=5 // pred_fallthru
      _
    %p182 = scmp.le.s32.totalorder 1, %s9
    %p183 = scmp.lt.s32.totalorder %s9, 3
    %p184 = pnand %p182, %p183
    %p185 = pneg %p184
    // Predicated region
    $region29: #{downsample_forward.1} parent=5 // pred_check
      _
    $region30: #{downsample_forward.1} parent=5 // pred_check_branch
      %187 = sbr.rel (%p184) target = $region32
    $region31: #{downsample_forward.1} parent=5 // pred_region
      %s188 = ssub.s32 %s9, 1
      %p189 = scmp.lt.s32.totalorder %s21, 1
      %s190 = scalar_select %p189, %s21, 1
      %p191 = scmp.lt.s32.totalorder %s19, 0
      %s192 = scalar_select %p191, %s19, 0
      %s193 = smul.addr %s190, 2
      %s194 = sadd.s32 %s192, %s193
      %s195 = smul.addr %s194, 8
      %s196 = scalar_lea.vmem %s0, %s195
      %p197 = pneg %p56
      %p198 = pneg %p53
      %p199 = scmp.lt.s32.totalorder %s20, 0
      %s200 = scalar_select %p199, %s20, 0
      %s201 = smul.addr %s200, 8
      %s202 = scalar_lea.vmem %s1, %s201
      %p203 = pneg %p82
      %p204 = pneg %p79
      %p205 = scmp.lt.s32.totalorder %s20, 0
      %s206 = scalar_select %p205, %s20, 0
      %s207 = smul.addr %s206, 8
      %s208 = scalar_lea.vmem %s2, %s207
      %p209 = pneg %p108
      %p210 = pneg %p105
      %p211 = pneg %p138
      %p212 = pneg %p135
      %p213 = scmp.lt.s32.totalorder %s21, 1
      %s214 = scalar_select %p213, %s21, 1
      %p215 = scmp.lt.s32.totalorder %s20, 0
      %s216 = scalar_select %p215, %s20, 0
      %p217 = scmp.lt.s32.totalorder %s19, 0
      %s218 = scalar_select %p217, %s19, 0
      %s219 = sadd.s32 %s218, %s216
      %s220 = sadd.s32 %s219, %s214
      %s221 = smul.addr %s220, 8
      %s222 = scalar_lea.vmem %s3, %s221
      %p223 = scmp.lt.s32.totalorder %s21, 1
      %s224 = scalar_select %p223, %s21, 1
      %p225 = scmp.lt.s32.totalorder %s19, 0
      %s226 = scalar_select %p225, %s19, 0
      %s227 = smul.addr %s224, 2
      %s228 = sadd.s32 %s226, %s227
      %s229 = smul.addr %s228, 8
      %s230 = scalar_lea.vmem %s0, %s229
      %p231 = scmp.lt.s32.totalorder %s20, 0
      %s232 = scalar_select %p231, %s20, 0
      %s233 = smul.addr %s232, 8
      %s234 = scalar_lea.vmem %s1, %s233
      %p235 = scmp.lt.s32.totalorder %s20, 0
      %s236 = scalar_select %p235, %s20, 0
      %s237 = smul.addr %s236, 8
      %s238 = scalar_lea.vmem %s2, %s237
      %p239 = scmp.lt.s32.totalorder %s21, 1
      %s240 = scalar_select %p239, %s21, 1
      %p241 = scmp.lt.s32.totalorder %s20, 0
      %s242 = scalar_select %p241, %s20, 0
      %p243 = scmp.lt.s32.totalorder %s19, 0
      %s244 = scalar_select %p243, %s19, 0
      %s245 = sadd.s32 %s244, %s242
      %s246 = sadd.s32 %s245, %s240
      %s247 = smul.addr %s246, 8
      %s248 = scalar_lea.vmem %s3, %s247
      %v249 = vld [vmem:[%s234] sm:$0xff]
      %v250 = vld [vmem:[%s230] sm:$0xff]
      %v251 = vld [vmem:[%s230 + $0x8] sm:$0xff]
      %v252 = vld [vmem:[%s238] sm:$0xff]
      %254 = vset.pattern.permute.xlu0 0
      %255 = vperm.xlu0 %254, %v252
      %v256 = vpop.permute.xlu0 %255
      %vm258 = vcmask 130048
      %v260 = vsel %vm258, %v249, 0
      %262 = vmatpush.msra.mxu0 0.0
      %263 = vmatpush.msra.mxu0 0.0
      %264 = vmatpush.msra.mxu0 0.0
      %265 = vmatpush.msra.mxu0 0.0
      %266 = vmatpush.msra.mxu0 0.0
      %267 = vmatpush.msra.mxu0 0.0
      %268 = vmatpush.msra.mxu0 0.0
      %269 = vmatpush.msra.mxu0 0.0
      %270 = vmatpush.msra.mxu0 0.0
      %271 = vmatpush.msra.mxu0 0.0
      %272 = vmatpush.msra.mxu0 0.0
      %273 = vmatpush.msra.mxu0 0.0
      %274 = vmatpush.msra.mxu0 0.0
      %275 = vmatpush.msra.mxu0 0.0
      %276 = vmatpush.msra.mxu0 %v251
      %277 = vmatpush.msra.mxu0 %v250
      %278 = vmatmul.f32.gmra.mxu0 %v260
      %v279 = vpop.f32.mrf.mxu0
      %v280 = vadd.f32 %v256, %v279
      %281 = vdwg.mxu0
      %vm282 = vcmask 523264
      %283 = vst.msk [vmem:[%s248] sm:$0xff] %vm282, %v280
      %p284 = scmp.lt.s32.totalorder %s21, 1
      %s285 = scalar_select %p284, %s21, 1
      %p286 = scmp.lt.s32.totalorder %s20, 0
      %s287 = scalar_select %p286, %s20, 0
      %p288 = scmp.lt.s32.totalorder %s19, 0
      %s289 = scalar_select %p288, %s19, 0
      %s290 = sadd.s32 %s289, %s287
      %s291 = sadd.s32 %s290, %s285
      %s292 = smul.addr %s291, 8
      %s293 = scalar_lea.vmem %s3, %s292
      // Predicated region
      $region33: #{downsample_forward.1} parent=31 // pred_check
        %p294 = pneg %p135
      $region34: #{downsample_forward.1} parent=31 // pred_check_branch
        %296 = sbr.rel (%p294) target = $region36
      $region35: #{downsample_forward.1} parent=31 // pred_region
        _
      $region36: #{downsample_forward.1} parent=31 // pred_fallthru
        _
    $region32: #{downsample_forward.1} parent=5 // pred_fallthru
      _
    %p297 = scmp.le.s32.totalorder 2, %s9
    // Predicated region
    $region37: #{downsample_forward.1} parent=5 // pred_check
      %p298 = pneg %p297
    $region38: #{downsample_forward.1} parent=5 // pred_check_branch
      %300 = sbr.rel (%p298) target = $region40
    $region39: #{downsample_forward.1} parent=5 // pred_region
      %s301 = ssub.s32 %s9, 2
      // Predicated region
      $region41: #{downsample_forward.1} parent=39 // pred_check
        %p302 = pneg %p141
      $region42: #{downsample_forward.1} parent=39 // pred_check_branch
        %304 = sbr.rel (%p302) target = $region44
      $region43: #{downsample_forward.1} parent=39 // pred_region
        %p305 = scmp.lt.s32.totalorder %s24, 1
        %s306 = scalar_select %p305, %s24, 1
        %p307 = scmp.lt.s32.totalorder %s23, 0
        %s308 = scalar_select %p307, %s23, 0
        %p309 = scmp.lt.s32.totalorder %s22, 0
        %s310 = scalar_select %p309, %s22, 0
        %s311 = sadd.s32 %s310, %s308
        %s312 = sadd.s32 %s311, %s306
        %s313 = smul.addr %s312, 8
        %s314 = scalar_lea.vmem %s3, %s313
      $region44: #{downsample_forward.1} parent=39 // pred_fallthru
        _
    $region40: #{downsample_forward.1} parent=5 // pred_fallthru
      _
  $region6: #{downsample_forward.1} parent=0 // loop_footer
    %s13 = sadd.s32 1, %s9
  $region7: #{downsample_forward.1} parent=0 // loop_footer_branch
    %8 = sbr.rel target = $region3
  $region8: #{downsample_forward.1} parent=0 // loop_exit
    _

</llo_original>
